<compile_context>
chip_gen: v7x
topology: tpu7x:2x2x1
jax: 0.10.0
libtpu: 0.0.40
codegen_flags: <defaults>
</compile_context>

<pallas_src>
import functools
import math

import jax
import jax.numpy as jnp
from jax.experimental import pallas as pl
from jax.experimental.pallas import tpu as pltpu


def _round_up(n: int, m: int) -> int:
    return ((n + m - 1) // m) * m


def token_embedding_kernel(x_ref, h_ref, w_ref, o_ref):
    # x_ref: (TL, C)   x_pad rows [t0, t0+TL)
    # h_ref: (2,  C)   x_pad rows [t0+TL, t0+TL+2)   (halo for this tile)
    # w_ref: (3C, D)   fused weight: row k*C + c multiplies x_pad[t0 + t + k, c]
    # o_ref: (TL, D)
    tl = o_ref.shape[0]
    full = jnp.concatenate([x_ref[...], h_ref[...]], axis=0)                 # (TL+2, C)
    # im2col: column block k holds x_pad rows [t0+k, t0+k+TL) — static offset slices, no rolls.
    im2col = jnp.concatenate(
        [full[0:tl, :], full[1:tl + 1, :], full[2:tl + 2, :]], axis=1)       # (TL, 3C)
    o_ref[...] = jnp.dot(im2col, w_ref[...],
                         preferred_element_type=jnp.float32).astype(o_ref.dtype)


@functools.partial(jax.jit, static_argnames=("tl_max",))
def token_embedding(x, weight, *, tl_max=1024):
    """x: (B, L, C_in) float32.  weight: (d_model, C_in, K=3) (PyTorch Conv1d layout)."""
    B, L, C = x.shape
    D, C_w, K = weight.shape
    assert C_w == C and K == 3

    # Fused weight (3C, D): row k*C + c multiplies x[b, (t + k - 1) mod L, c].  Repacked once
    # (wrapper is jitted, so XLA hoists it off the hot path); constant index_map keeps it resident.
    w_fused = jnp.transpose(weight, (2, 1, 0)).reshape(3 * C, D)

    # Circular halo pad along the sequence axis (per-batch): x_pad[:, i] = x[:, (i - 1) mod L].
    x_pad = jnp.concatenate([x[:, -1:, :], x, x[:, :1, :]], axis=1)          # (B, L+2, C)

    # Sequence tiling: TL multiple of 8 sublanes, capped so double-buffered tiles stay well under
    # VMEM on all generations (v5e/v6e/v7x).  Pad L so every tile is full-size; tail rows are
    # computed on zeros and sliced off below.
    TL = min(tl_max, _round_up(L, 8))
    NT = pl.cdiv(L, TL)
    L_pad = NT * TL
    if L_pad > L:
        x_pad = jnp.pad(x_pad, ((0, 0), (0, L_pad - L), (0, 0)))             # (B, L_pad+2, C)

    x_main = x_pad[:, :L_pad, :]                                             # (B, L_pad, C)

    # Per-tile 2-row halo: x_pad rows [(j+1)*TL, (j+1)*TL + 2)  ->  (B, NT, 2, C).
    starts = (jnp.arange(NT, dtype=jnp.int32) + 1) * TL
    row_idx = starts[:, None] + jnp.arange(2, dtype=jnp.int32)[None, :]      # (NT, 2)
    halo = x_pad[:, row_idx, :]                                              # (B, NT, 2, C)

    out = pl.pallas_call(
        token_embedding_kernel,
        out_shape=jax.ShapeDtypeStruct((B, L_pad, D), x.dtype),
        grid_spec=pltpu.PrefetchScalarGridSpec(
            num_scalar_prefetch=0,
            grid=(B, NT),
            in_specs=[
                pl.BlockSpec((None, TL, C), lambda b, j: (b, j, 0)),
                pl.BlockSpec((None, None, 2, C), lambda b, j: (b, j, 0, 0)),
                pl.BlockSpec((3 * C, D), lambda b, j: (0, 0)),
            ],
            out_specs=pl.BlockSpec((None, TL, D), lambda b, j: (b, j, 0)),
        ),
        compiler_params=pltpu.CompilerParams(
            dimension_semantics=("parallel", "parallel")),
    )(x_main, halo, w_fused)

    return out[:, :L, :] if L_pad > L else out


def init_conv_weight(key, d_model, c_in, kernel_size=3):
    # Mirror nn.init.kaiming_normal_(w, mode='fan_in', nonlinearity='leaky_relu'):
    # fan_in = c_in * kernel_size, gain = sqrt(2 / (1 + 0.01**2)), std = gain / sqrt(fan_in)
    fan_in = c_in * kernel_size
    gain = math.sqrt(2.0 / (1.0 + 0.01 ** 2))
    std = gain / math.sqrt(fan_in)
    return std * jax.random.normal(key, (d_model, c_in, kernel_size), dtype=jnp.float32)


def reference_token_embedding(x, weight):
    """Pure-JAX reference: circular pad + explicit conv contraction."""
    # x: (B, L, C), weight: (D, C, 3)
    x_pad = jnp.concatenate([x[:, -1:, :], x, x[:, :1, :]], axis=1)          # (B, L+2, C)
    L = x.shape[1]
    taps = jnp.stack([x_pad[:, k:k + L, :] for k in range(3)], axis=0)       # (3, B, L, C)
    return jnp.einsum('kblc,dck->bld', taps, weight)


if __name__ == "__main__":
    key = jax.random.PRNGKey(0)
    kx, kw, kx2 = jax.random.split(key, 3)

    # Small case consistent with the module (B=2, L=16, C_in=8, d_model=32).
    B, L, C_in, d_model = 2, 16, 8, 32
    x = jax.random.normal(kx, (B, L, C_in), dtype=jnp.float32)
    weight = init_conv_weight(kw, d_model, C_in, kernel_size=3)

    out = jax.block_until_ready(token_embedding(x, weight))
    ref = reference_token_embedding(x, weight)
    assert out.shape == (B, L, d_model)
    assert jnp.allclose(out, ref, atol=1e-5, rtol=1e-5), "mismatch vs reference (single tile)"

    # Multi-tile case with non-divisible L: exercises per-tile halos and tail padding.
    L2 = 40
    x2 = jax.random.normal(kx2, (B, L2, C_in), dtype=jnp.float32)
    out2 = jax.block_until_ready(token_embedding(x2, weight, tl_max=16))
    ref2 = reference_token_embedding(x2, weight)
    assert out2.shape == (B, L2, d_model)
    assert jnp.allclose(out2, ref2, atol=1e-5, rtol=1e-5), "mismatch vs reference (multi tile)"

    print("KERNEL_OK")
</pallas_src>

<mosaic_0001>
module attributes {stable_mosaic.version = 11 : i64} {
  func.func @token_embedding_kernel(%arg0: i32, %arg1: i32, %arg2: memref<1x16x8xf32, #tpu.memory_space<vmem>>, %arg3: memref<1x1x2x8xf32, #tpu.memory_space<vmem>>, %arg4: memref<24x32xf32, #tpu.memory_space<vmem>>, %arg5: memref<1x16x32xf32, #tpu.memory_space<vmem>>) attributes {dimension_semantics = [#tpu.dimension_semantics<parallel>, #tpu.dimension_semantics<parallel>], iteration_bounds = array<i64: 2, 1>, scalar_prefetch = 0 : i64, scratch_operands = 0 : i64, tpu.core_type = #tpu.core_type<tc>, window_params = [{transform_indices = @transform_0, window_bounds = array<i64: 1, 16, 8>}, {transform_indices = @transform_1, window_bounds = array<i64: 1, 1, 2, 8>}, {pipeline_mode = #tpu.pipeline_mode<synchronous>, transform_indices = @transform_2, window_bounds = array<i64: 24, 32>}, {transform_indices = @transform_3, window_bounds = array<i64: 1, 16, 32>}]} {
    %c0 = arith.constant 0 : index
    %c0_0 = arith.constant 0 : index
    %c0_1 = arith.constant 0 : index
    %0 = vector.load %arg2[%c0, %c0_0, %c0_1] : memref<1x16x8xf32, #tpu.memory_space<vmem>>, vector<1x16x8xf32>
    %1 = vector.shape_cast %0 : vector<1x16x8xf32> to vector<16x8xf32>
    %c0_2 = arith.constant 0 : index
    %c0_3 = arith.constant 0 : index
    %c0_4 = arith.constant 0 : index
    %c0_5 = arith.constant 0 : index
    %2 = vector.load %arg3[%c0_2, %c0_3, %c0_4, %c0_5] : memref<1x1x2x8xf32, #tpu.memory_space<vmem>>, vector<1x1x2x8xf32>
    %3 = vector.shape_cast %2 : vector<1x1x2x8xf32> to vector<2x8xf32>
    %4 = tpu.concatenate %1, %3 in 0 : vector<16x8xf32>, vector<2x8xf32> -> vector<18x8xf32>
    %5 = vector.extract_strided_slice %4 {offsets = [0, 0], sizes = [16, 8], strides = [1, 1]} : vector<18x8xf32> to vector<16x8xf32>
    %6 = vector.extract_strided_slice %4 {offsets = [1, 0], sizes = [16, 8], strides = [1, 1]} : vector<18x8xf32> to vector<16x8xf32>
    %7 = vector.extract_strided_slice %4 {offsets = [2, 0], sizes = [16, 8], strides = [1, 1]} : vector<18x8xf32> to vector<16x8xf32>
    %8 = tpu.concatenate %5, %6, %7 in 1 : vector<16x8xf32>, vector<16x8xf32>, vector<16x8xf32> -> vector<16x24xf32>
    %c0_6 = arith.constant 0 : index
    %c0_7 = arith.constant 0 : index
    %9 = vector.load %arg4[%c0_6, %c0_7] : memref<24x32xf32, #tpu.memory_space<vmem>>, vector<24x32xf32>
    %cst = arith.constant dense<0.000000e+00> : vector<16x32xf32>
    %10 = tpu.matmul %8, %9, %cst {dimension_numbers = #tpu.dot_dimension_numbers<[1], [0], [0], [1], [0, 0, 1, 1], [], []>} : vector<16x24xf32>, vector<24x32xf32>, vector<16x32xf32> -> vector<16x32xf32>
    %c0_8 = arith.constant 0 : index
    %c0_9 = arith.constant 0 : index
    %c0_10 = arith.constant 0 : index
    %11 = vector.load %arg5[%c0_8, %c0_9, %c0_10] : memref<1x16x32xf32, #tpu.memory_space<vmem>>, vector<1x16x32xf32>
    %12 = vector.shape_cast %11 : vector<1x16x32xf32> to vector<16x32xf32>
    %13 = vector.shape_cast %10 : vector<16x32xf32> to vector<1x16x32xf32>
    tpu.vector_store %arg5[%c0_8, %c0_9, %c0_10], %13 {strides = array<i32>} : memref<1x16x32xf32, #tpu.memory_space<vmem>>, vector<1x16x32xf32>,
    return
  }
  func.func @transform_0(%arg0: i32, %arg1: i32) -> (i32, i32, i32) {
    %c0_i32 = arith.constant 0 : i32
    %c0_i32_0 = arith.constant 0 : i32
    return %arg0, %arg1, %c0_i32 : i32, i32, i32
  }
  func.func @transform_1(%arg0: i32, %arg1: i32) -> (i32, i32, i32, i32) {
    %c0_i32 = arith.constant 0 : i32
    %c0_i32_0 = arith.constant 0 : i32
    %c0_i32_1 = arith.constant 0 : i32
    return %arg0, %arg1, %c0_i32, %c0_i32_0 : i32, i32, i32, i32
  }
  func.func @transform_2(%arg0: i32, %arg1: i32) -> (i32, i32) {
    %c0_i32 = arith.constant 0 : i32
    %c0_i32_0 = arith.constant 0 : i32
    %c0_i32_1 = arith.constant 0 : i32
    return %c0_i32, %c0_i32_0 : i32, i32
  }
  func.func @transform_3(%arg0: i32, %arg1: i32) -> (i32, i32, i32) {
    %c0_i32 = arith.constant 0 : i32
    %c0_i32_0 = arith.constant 0 : i32
    return %arg0, %arg1, %c0_i32 : i32, i32, i32
  }
}

</mosaic_0001>

<llo_original>
// kernel: token_embedding.1
$region0: #{token_embedding.1}
  #allocation0 [shape = 'u32[]', space=smem, size = 0x4, offset = 0x4, fixed_abs, tag = 'smem constant byte address 0x4 - core index']
  #allocation1 [shape = 'u32[144,128]{1,0:T(1,128)}', space=vmem, size = 0x12000, scoped, tag = 'internal scratch']
  %s0 = inlined_call_operand.vmem [shape: f32[2,16,8], index: 0, kind: input, shape index: {}]
  %s1 = inlined_call_operand.vmem [shape: f32[2,1,2,8], index: 1, kind: input, shape index: {}]
  %s2 = inlined_call_operand.vmem [shape: f32[24,32], index: 2, kind: input, shape index: {}]
  %s3 = inlined_call_operand.hbm [shape: f32[2,16,32], index: 3, kind: output, shape index: {}]
  %s4 = sld [smem:[#allocation0]]
  $region45: #{token_embedding.1} parent=0
    _
  %s6 = ssub.s32 1, %s4
  %s7 = scalar_select 0, %s6, %s4
  $region1: #{token_embedding.1} parent=0
    #allocation2 [shape = 'u8[16384]{0}', space=vmem, size = 0x4000, scoped, tag = 'output window, operand 0']
    #allocation3 [shape = 's32[2]{0}', space=sflag, size = 0x8, scoped, tag = 'scoped memory for token_embedding.1']
    %8 = vsyncpa [#allocation3], 0
    %s9 = scalar_lea.sflag [#allocation3], 1
    %10 = vsyncpa %s9, 0
    loop: start=0, step=1, limit=4
    $region2: #{token_embedding.1} parent=1 // loop_pre_header
      _
    $region3: #{token_embedding.1} parent=1 // loop_header
      %s12 = sphi 0, %s16
      %p13 = scmp.ge.s32.totalorder %s12, 4
      %s19 = sphi 0, %s31
      %s20 = sphi 0, %s27
      %s21 = sphi 0, %s19
      %s22 = sphi 0, %s20
      %s23 = sphi 0, %s21
      %s24 = sphi 0, %s22
      %s36 = sphi 0, %s38
      %s39 = sphi 0, %s36
      %s40 = sphi 0, %s39
      %s56 = sphi 0, %s40
      %s64 = sphi 0, %s66
      %s67 = sphi 0, %s64
      %s68 = sphi 0, %s67
      %s84 = sphi 0, %s68
      %s88 = sphi 0, %s88
      %s90 = sphi 0, %s88
      %s91 = sphi 0, %s90
      %s105 = sphi 0, %s91
      %s113 = sphi 0, %s115
      %s116 = sphi 0, %s113
      %s117 = sphi 0, %s116
      %s133 = sphi 0, %s117
    $region4: #{token_embedding.1} parent=1 // loop_header_branch
      %15 = sbr.rel (%p13) target = $region8
    $region5: #{token_embedding.1} parent=1 // loop_body
      %s17 = ssub.s32 %s12, 1
      %s18 = ssub.s32 %s12, 2
      %s25 = sadd.s32 1, %s20
      %p26 = scmp.ge.s32.totalorder %s25, 1
      %s27 = scalar_select %p26, 0, %s25
      %s28 = sadd.s32 1, %s19
      %s29 = scalar_select %p26, %s28, %s19
      %p30 = scmp.ge.s32.totalorder %s29, 2
      %s31 = scalar_select %p30, 0, %s29
      %s32 = ssub.s32 %s19, %s31
      %s33 = ssub.s32 %s20, %s27
      %s34 = sor.u32 %s32, %s33
      %p35 = scmp.eq.s32.totalorder %s34, 0
      %s37 = sadd.s32 %s36, 1
      %s38 = scalar_select %p35, %s36, %s37
      %p41 = pneg %p35
      %p42 = scmp.eq.s32.totalorder %s12, 1
      %p43 = por %p41, %p42
      %p44 = scmp.ne.s32.totalorder %s36, %s39
      %p45 = scmp.eq.s32.totalorder %s12, 0
      %p46 = por %p44, %p45
      %p47 = scmp.ne.s32.totalorder %s36, %s39
      %p48 = scmp.eq.s32.totalorder %s17, 1
      %p49 = por %p47, %p48
      %p50 = scmp.ne.s32.totalorder %s39, %s40
      %p51 = scmp.eq.s32.totalorder %s17, 0
      %p52 = por %p50, %p51
      %p53 = scmp.ne.s32.totalorder %s39, %s40
      %p54 = scmp.eq.s32.totalorder %s18, 1
      %p55 = por %p53, %p54
      %p57 = scmp.ne.s32.totalorder %s40, %s56
      %p58 = scmp.eq.s32.totalorder %s18, 0
      %p59 = por %p57, %p58
      %s60 = ssub.s32 %s19, %s31
      %s61 = ssub.s32 %s20, %s27
      %s62 = sor.u32 %s60, %s61
      %p63 = scmp.eq.s32.totalorder %s62, 0
      %s65 = sadd.s32 %s64, 1
      %s66 = scalar_select %p63, %s64, %s65
      %p69 = pneg %p63
      %p70 = scmp.eq.s32.totalorder %s12, 1
      %p71 = por %p69, %p70
      %p72 = scmp.ne.s32.totalorder %s64, %s67
      %p73 = scmp.eq.s32.totalorder %s12, 0
      %p74 = por %p72, %p73
      %p75 = scmp.ne.s32.totalorder %s64, %s67
      %p76 = scmp.eq.s32.totalorder %s17, 1
      %p77 = por %p75, %p76
      %p78 = scmp.ne.s32.totalorder %s67, %s68
      %p79 = scmp.eq.s32.totalorder %s17, 0
      %p80 = por %p78, %p79
      %p81 = scmp.ne.s32.totalorder %s67, %s68
      %p82 = scmp.eq.s32.totalorder %s18, 1
      %p83 = por %p81, %p82
      %p85 = scmp.ne.s32.totalorder %s68, %s84
      %p86 = scmp.eq.s32.totalorder %s18, 0
      %p87 = por %p85, %p86
      %s89 = sadd.s32 %s88, 1
      %p92 = scmp.eq.s32.totalorder %s12, 1
      %p93 = scmp.ne.s32.totalorder %s88, %s90
      %p94 = scmp.eq.s32.totalorder %s12, 0
      %p95 = por %p93, %p94
      %p96 = scmp.ne.s32.totalorder %s88, %s90
      %p97 = scmp.eq.s32.totalorder %s17, 1
      %p98 = por %p96, %p97
      %p99 = scmp.ne.s32.totalorder %s90, %s91
      %p100 = scmp.eq.s32.totalorder %s17, 0
      %p101 = por %p99, %p100
      %p102 = scmp.ne.s32.totalorder %s90, %s91
      %p103 = scmp.eq.s32.totalorder %s18, 1
      %p104 = por %p102, %p103
      %p106 = scmp.ne.s32.totalorder %s91, %s105
      %p107 = scmp.eq.s32.totalorder %s18, 0
      %p108 = por %p106, %p107
      %s109 = ssub.s32 %s19, %s31
      %s110 = ssub.s32 %s20, %s27
      %s111 = sor.u32 %s109, %s110
      %p112 = scmp.eq.s32.totalorder %s111, 0
      %s114 = sadd.s32 %s113, 1
      %s115 = scalar_select %p112, %s113, %s114
      %p118 = pneg %p112
      %p119 = scmp.eq.s32.totalorder %s12, 1
      %p120 = por %p118, %p119
      %p121 = scmp.ne.s32.totalorder %s113, %s116
      %p122 = scmp.eq.s32.totalorder %s12, 0
      %p123 = por %p121, %p122
      %p124 = scmp.ne.s32.totalorder %s113, %s116
      %p125 = scmp.eq.s32.totalorder %s17, 1
      %p126 = por %p124, %p125
      %p127 = scmp.ne.s32.totalorder %s116, %s117
      %p128 = scmp.eq.s32.totalorder %s17, 0
      %p129 = por %p127, %p128
      %p130 = scmp.ne.s32.totalorder %s116, %s117
      %p131 = scmp.eq.s32.totalorder %s18, 1
      %p132 = por %p130, %p131
      %p134 = scmp.ne.s32.totalorder %s117, %s133
      %p135 = scmp.eq.s32.totalorder %s18, 0
      %p136 = por %p134, %p135
      %p137 = scmp.le.s32.totalorder 1, %s12
      %p138 = scmp.lt.s32.totalorder %s12, 3
      %p139 = pnand %p137, %p138
      %p140 = pneg %p139
      // Predicated region
      $region9: #{token_embedding.1} parent=5 // pred_check
        _
      $region10: #{token_embedding.1} parent=5 // pred_check_branch
        %142 = sbr.rel (%p139) target = $region12
      $region11: #{token_embedding.1} parent=5 // pred_region
        %s143 = ssub.s32 %s12, 1
        // Predicated region
        $region13: #{token_embedding.1} parent=11 // pred_check
          %p144 = pneg %p101
        $region14: #{token_embedding.1} parent=11 // pred_check_branch
          %146 = sbr.rel (%p144) target = $region16
        $region15: #{token_embedding.1} parent=11 // pred_region
          _
        $region16: #{token_embedding.1} parent=11 // pred_fallthru
          _
      $region12: #{token_embedding.1} parent=5 // pred_fallthru
        _
      %p147 = scmp.lt.s32.totalorder %s12, 2
      // Predicated region
      $region17: #{token_embedding.1} parent=5 // pred_check
        %p148 = pneg %p147
      $region18: #{token_embedding.1} parent=5 // pred_check_branch
        %150 = sbr.rel (%p148) target = $region20
      $region19: #{token_embedding.1} parent=5 // pred_region
        // Predicated region
        $region21: #{token_embedding.1} parent=19 // pred_check
          %p151 = pneg %p46
        $region22: #{token_embedding.1} parent=19 // pred_check_branch
          %153 = sbr.rel (%p151) target = $region24
        $region23: #{token_embedding.1} parent=19 // pred_region
          %s154 = smul.u32 2, %s20
          %p155 = scmp.lt.s32.totalorder %s19, 1
          %s156 = scalar_select %p155, %s19, 1
          %p157 = scmp.lt.s32.totalorder %s154, 1
          %s158 = scalar_select %p157, %s154, 1
          %s159 = smul.addr %s156, 2
          %s160 = sadd.s32 %s158, %s159
          %s161 = smul.addr %s160, 8
          %s162 = scalar_lea.vmem %s0, %s161
          %s163 = smul.u32 2, %s20
        $region24: #{token_embedding.1} parent=19 // pred_fallthru
          _
        // Predicated region
        $region25: #{token_embedding.1} parent=19 // pred_check
          %p164 = pneg %p74
        $region26: #{token_embedding.1} parent=19 // pred_check_branch
          %166 = sbr.rel (%p164) target = $region28
        $region27: #{token_embedding.1} parent=19 // pred_region
          %p167 = scmp.lt.s32.totalorder %s19, 1
          %s168 = scalar_select %p167, %s19, 1
          %p169 = scmp.lt.s32.totalorder %s20, 0
          %s170 = scalar_select %p169, %s20, 0
          %s171 = sadd.s32 %s170, %s168
          %s172 = smul.addr %s171, 2
          %s173 = scalar_lea.vmem %s1, %s172
        $region28: #{token_embedding.1} parent=19 // pred_fallthru
          _
      $region20: #{token_embedding.1} parent=5 // pred_fallthru
        _
      %p174 = scmp.le.s32.totalorder 1, %s12
      %p175 = scmp.lt.s32.totalorder %s12, 3
      %p176 = pnand %p174, %p175
      %p177 = pneg %p176
      // Predicated region
      $region29: #{token_embedding.1} parent=5 // pred_check
        _
      $region30: #{token_embedding.1} parent=5 // pred_check_branch
        %179 = sbr.rel (%p176) target = $region32
      $region31: #{token_embedding.1} parent=5 // pred_region
        %s180 = ssub.s32 %s12, 1
        %s181 = smul.u32 2, %s22
        %p182 = scmp.lt.s32.totalorder %s21, 1
        %s183 = scalar_select %p182, %s21, 1
        %p184 = scmp.lt.s32.totalorder %s181, 1
        %s185 = scalar_select %p184, %s181, 1
        %s186 = smul.addr %s183, 2
        %s187 = sadd.s32 %s185, %s186
        %s188 = smul.addr %s187, 8
        %s189 = scalar_lea.vmem %s0, %s188
        %p190 = pneg %p52
        %p191 = pneg %p49
        %p192 = scmp.lt.s32.totalorder %s21, 1
        %s193 = scalar_select %p192, %s21, 1
        %p194 = scmp.lt.s32.totalorder %s22, 0
        %s195 = scalar_select %p194, %s22, 0
        %s196 = sadd.s32 %s195, %s193
        %s197 = smul.addr %s196, 2
        %s198 = scalar_lea.vmem %s1, %s197
        %p199 = pneg %p80
        %p200 = pneg %p77
        %p201 = pneg %p101
        %p202 = pneg %p98
        %p203 = pneg %p129
        %p204 = pneg %p126
        %s205 = sand.u32 %s116, 1
        %s206 = scalar_lea.sflag [#allocation3], %s205
        %s207 = sand.u32 %s116, 1
        %s208 = smul.addr %s207, 16
        %s209 = scalar_lea.vmem [#allocation2], %s208
        %s210 = smul.u32 2, %s22
        %p211 = scmp.lt.s32.totalorder %s21, 1
        %s212 = scalar_select %p211, %s21, 1
        %p213 = scmp.lt.s32.totalorder %s210, 1
        %s214 = scalar_select %p213, %s210, 1
        %s215 = smul.addr %s212, 2
        %s216 = sadd.s32 %s214, %s215
        %s217 = smul.addr %s216, 8
        %s218 = scalar_lea.vmem %s0, %s217
        %s219 = smul.u32 2, %s22
        %p220 = scmp.lt.s32.totalorder %s21, 1
        %s221 = scalar_select %p220, %s21, 1
        %p222 = scmp.lt.s32.totalorder %s22, 0
        %s223 = scalar_select %p222, %s22, 0
        %s224 = sadd.s32 %s223, %s221
        %s225 = smul.addr %s224, 2
        %s226 = scalar_lea.vmem %s1, %s225
        %s227 = smul.u32 2, %s22
        %v228 = vld [vmem:[%s218] sm:$0xff]
        %v229 = vld [vmem:[%s218 + $0x8] sm:$0xff]
        %v230 = vld [vmem:[%s226] sm:$0x3]
        %vm234 = vcmask 1046528
        %v235 = vrot.slane %v228, 1
        %v236 = vrot.slane %v229, 1
        %v237 = vsel %vm234, %v235, %v236
        %v238 = vrot.slane %v230, 1
        %v239 = vsel %vm234, %v236, %v238
        %240 = vrot.lane.b32.xlu0 %v237, 8
        %v241 = vpop.permute.xlu0 %240
        %242 = vrot.lane.b32.xlu0 %v239, 8
        %v243 = vpop.permute.xlu0 %242
        %vm246 = vcmask 1045504
        %v247 = vrot.slane %v228, 2
        %v248 = vrot.slane %v229, 2
        %v249 = vsel %vm246, %v247, %v248
        %v250 = vrot.slane %v230, 2
        %v251 = vsel %vm246, %v248, %v250
        %252 = vrot.lane.b32.xlu0 %v249, 16
        %v253 = vpop.permute.xlu0 %252
        %254 = vrot.lane.b32.xlu0 %v251, 16
        %v255 = vpop.permute.xlu0 %254
        %vm258 = vcmask 64512
        %v259 = vsel %vm258, %v228, %v241
        %v260 = vsel %vm258, %v229, %v243
        %vm261 = vcmask 130048
        %v262 = vsel %vm261, %v259, %v253
        %v263 = vsel %vm261, %v260, %v255
        %v264 = vld [vmem:[%s2] sm:$0xff]
        %v265 = vld [vmem:[%s2 + $0x8] sm:$0xff]
        %v266 = vld [vmem:[%s2 + $0x10] sm:$0xff]
        %vm267 = vcmask 195584
        %v269 = vsel %vm267, %v262, 0
        %v272 = vsel %vm267, %v263, 0
        %274 = vmatprep.subr.mxu0 0.0
        %275 = vmatpush1.msra.mxu0 %v264
        %276 = vmatprep.subr.mxu0 0.0
        %277 = vmatpush1.msra.mxu0 %v265
        %278 = vmatprep.subr.mxu0 0.0
        %279 = vmatpush1.msra.mxu0 %v266
        %280 = vmatprep.subr.mxu0 0.0
        %281 = vmatpush1.msra.mxu0 0.0
        %282 = vmatprep.subr.mxu0 0.0
        %283 = vmatpush1.msra.mxu0 0.0
        %284 = vmatprep.subr.mxu0 0.0
        %285 = vmatpush1.msra.mxu0 0.0
        %286 = vmatprep.subr.mxu0 0.0
        %287 = vmatpush1.msra.mxu0 0.0
        %288 = vmatprep.subr.mxu0 0.0
        %289 = vmatpush1.msra.mxu0 0.0
        %290 = vmatprep.subr.mxu0 0.0
        %291 = vmatpush1.msra.mxu0 0.0
        %292 = vmatprep.subr.mxu0 0.0
        %293 = vmatpush1.msra.mxu0 0.0
        %294 = vmatprep.subr.mxu0 0.0
        %295 = vmatpush1.msra.mxu0 0.0
        %296 = vmatprep.subr.mxu0 0.0
        %297 = vmatpush1.msra.mxu0 0.0
        %298 = vmatprep.subr.mxu0 0.0
        %299 = vmatpush1.msra.mxu0 0.0
        %300 = vmatprep.subr.mxu0 0.0
        %301 = vmatpush1.msra.mxu0 0.0
        %302 = vmatprep.subr.mxu0 0.0
        %303 = vmatpush1.msra.mxu0 0.0
        %304 = vmatprep.subr.mxu0 0.0
        %305 = vmatpush1.msra.mxu0 0.0
        %306 = vmatprep.subr.mxu0 0.0
        %307 = vmatpush1.msra.mxu0 0.0
        %308 = vmatprep.subr.mxu0 0.0
        %309 = vmatpush1.msra.mxu0 0.0
        %310 = vmatprep.subr.mxu0 0.0
        %311 = vmatpush1.msra.mxu0 0.0
        %312 = vmatprep.subr.mxu0 0.0
        %313 = vmatpush1.msra.mxu0 0.0
        %314 = vmatprep.subr.mxu0 0.0
        %315 = vmatpush1.msra.mxu0 0.0
        %316 = vmatprep.subr.mxu0 0.0
        %317 = vmatpush1.msra.mxu0 0.0
        %318 = vmatprep.subr.mxu0 0.0
        %319 = vmatpush1.msra.mxu0 0.0
        %320 = vmatprep.subr.mxu0 0.0
        %321 = vmatpush1.msra.mxu0 0.0
        %322 = vmatprep.subr.mxu0 0.0
        %323 = vmatpush1.msra.mxu0 0.0
        %324 = vmatprep.subr.mxu0 0.0
        %325 = vmatpush1.msra.mxu0 0.0
        %326 = vmatprep.subr.mxu0 0.0
        %327 = vmatpush1.msra.mxu0 0.0
        %328 = vmatprep.subr.mxu0 0.0
        %329 = vmatpush1.msra.mxu0 0.0
        %330 = vmatprep.subr.mxu0 0.0
        %331 = vmatpush1.msra.mxu0 0.0
        %332 = vmatprep.subr.mxu0 0.0
        %333 = vmatpush1.msra.mxu0 0.0
        %334 = vmatprep.subr.mxu0 0.0
        %335 = vmatpush1.msra.mxu0 0.0
        %336 = vmatprep.subr.mxu0 0.0
        %337 = vmatpush1.msra.mxu0 0.0
        %338 = vmatprep.mubr.f32.mxu0 0.0
        %339 = vmatmul.mubr.f32.gmra.mrb[0].mxu0 %v269
        %v340 = vpop.f32.mrb[0].mxu0
        %v341 = vadd.f32 0.0, %v340
        %v342 = vpop.f32.mrb[0].mxu0
        %343 = vmatprep.mubr.f32.mxu0 0.0
        %344 = vmatmul.mubr.f32.gmra.mrb[0].mxu0 %v272
        %v345 = vpop.f32.mrb[0].mxu0
        %v346 = vadd.f32 0.0, %v345
        %v347 = vpop.f32.mrb[0].mxu0
        %348 = vdwg.mxu0
        %vm349 = vcmask 261120
        %350 = vst.msk [vmem:[%s209] sm:$0xff] %vm349, %v341
        %351 = vst.msk [vmem:[%s209 + $0x8] sm:$0xff] %vm349, %v346
        %s352 = sand.u32 %s116, 1
        %s353 = scalar_lea.sflag [#allocation3], %s352
        %s354 = sand.u32 %s116, 1
        %s355 = smul.addr %s354, 16
        %s356 = scalar_lea.vmem [#allocation2], %s355
        // Predicated region
        $region33: #{token_embedding.1} parent=31 // pred_check
          %p357 = pneg %p126
        $region34: #{token_embedding.1} parent=31 // pred_check_branch
          %359 = sbr.rel (%p357) target = $region36
        $region35: #{token_embedding.1} parent=31 // pred_region
          %s360 = smul.u32 2, %s22
          %s362 = ssub.s32 256, 256
          %363 = vsyncadd %s353, %s362
          %s364 = smul.addr %s21, 2
          %s365 = sadd.s32 %s360, %s364
          %s366 = smul.addr %s365, 128
          %s367 = scalar_lea.hbm %s3, %s366
          %s368 = sshll.u32 %s356, 4
          %s369 = int_to_ptr.vmem [resolvable:$true] %s368
          %374 = dma.vmem_to_hbm [thread:$0]  %s369, 256, %s367, %s353, 128, 128, 8
        $region36: #{token_embedding.1} parent=31 // pred_fallthru
          _
      $region32: #{token_embedding.1} parent=5 // pred_fallthru
        _
      %p375 = scmp.le.s32.totalorder 2, %s12
      // Predicated region
      $region37: #{token_embedding.1} parent=5 // pred_check
        %p376 = pneg %p375
      $region38: #{token_embedding.1} parent=5 // pred_check_branch
        %378 = sbr.rel (%p376) target = $region40
      $region39: #{token_embedding.1} parent=5 // pred_region
        %s379 = ssub.s32 %s12, 2
        // Predicated region
        $region41: #{token_embedding.1} parent=39 // pred_check
          %p380 = pneg %p132
        $region42: #{token_embedding.1} parent=39 // pred_check_branch
          %382 = sbr.rel (%p380) target = $region44
        $region43: #{token_embedding.1} parent=39 // pred_region
          %s383 = sand.u32 %s117, 1
          %s384 = scalar_lea.sflag [#allocation3], %s383
          %s385 = sand.u32 %s117, 1
          %s386 = smul.addr %s385, 16
          %s387 = scalar_lea.vmem [#allocation2], %s386
          %388 = dma.done %s384, 256
        $region44: #{token_embedding.1} parent=39 // pred_fallthru
          _
      $region40: #{token_embedding.1} parent=5 // pred_fallthru
        _
    $region6: #{token_embedding.1} parent=1 // loop_footer
      %s16 = sadd.s32 1, %s12
    $region7: #{token_embedding.1} parent=1 // loop_footer_branch
      %11 = sbr.rel target = $region3
    $region8: #{token_embedding.1} parent=1 // loop_exit
      _
    %389 = vsyncpa [#allocation3], 1
    %s390 = scalar_lea.sflag [#allocation3], 1
    %391 = vsyncpa %s390, 1

</llo_original>
